<compile_context>
chip_gen: v5e
topology: v5e:2x2
jax: 0.10.0
libtpu: 0.0.40
codegen_flags: <defaults>
</compile_context>

<pallas_src>
import functools

import jax
import jax.numpy as jnp
from jax import lax
from jax.experimental import pallas as pl
from jax.experimental.pallas import tpu as pltpu

_LANES = 128
# Per-input, per-pipeline-buffer tile size. 3 inputs x 2 buffers x 2 MiB =
# 12 MiB: inside every generation's default scoped-VMEM limit.
_TILE_BYTES_PER_INPUT = 2 * 1024 * 1024


def _round_up(x, m):
    return ((x + m - 1) // m) * m


def _tensorcores_per_chip():
    """Best-effort TensorCore count: 2 on v7x, 1 on v5e/v6e (and unknown)."""
    try:
        kind = jax.devices()[0].device_kind.lower()
    except Exception:  # defensive: never let detection break the kernel
        return 1
    return 2 if "7" in kind else 1


def _map_loss_kernel(t_ref, m_ref, s_ref, o_ref, *, tile_rows, blocks_per_part,
                     rows, needs_mask):
    part = pl.program_id(0)   # partition (TensorCore) index
    step = pl.program_id(1)   # block index within the partition

    @pl.when(step == 0)
    def _():
        o_ref[...] = jnp.zeros_like(o_ref)

    t = t_ref[...].astype(jnp.float32)
    m = m_ref[...].astype(jnp.float32)
    s = s_ref[...].astype(jnp.float32)
    d = t - m
    # Exact divide + log: pl.reciprocal(approx=True) would be cheaper on v7x
    # but breaks the 1e-5 tolerance against the reference, so keep it exact.
    val = d * d / s + jnp.log(s)

    def _accumulate(v):
        # (tile_rows, 128) -> (tile_rows//8, 8, 128); the axis-0 sum adds whole
        # f32 vregs (pure VALU) into the resident (8, 128) output block, so no
        # cross-lane / cross-sublane XLU reduce is paid per step.
        o_ref[...] += v.reshape(tile_rows // 8, 8, _LANES).sum(axis=0)

    if needs_mask:
        block = part * blocks_per_part + step
        last_full_block = rows // tile_rows  # python int

        @pl.when(block < last_full_block)
        def _():
            _accumulate(val)  # full block: no masking cost

        @pl.when(block >= last_full_block)
        def _():
            # Tail block (partial rows) or phantom block (re-reads the last
            # real block through the clamped index_map; rows_left <= 0 masks
            # every row). Cheap mask: one sublane iota + scalar threshold.
            row_ids = lax.broadcasted_iota(jnp.int32, (tile_rows, _LANES), 0)
            rows_left = rows - block * tile_rows
            _accumulate(jnp.where(row_ids < rows_left, val, jnp.float32(0.0)))
    else:
        _accumulate(val)


def map_loss_pretrain(target, mu, sigma_mu, sigma_n, sigma_y):
    """Pallas TPU implementation of MAPLoss_Pretrain.forward (forward only)."""
    del sigma_mu, sigma_n  # unused by the reference forward
    # TODO(synk): add a custom_vjp if gradients w.r.t. sigma_y are ever needed.
    target = lax.stop_gradient(target)  # .detach()
    mu = lax.stop_gradient(mu)          # .detach()
    assert target.shape == mu.shape == sigma_y.shape, "shapes must match"

    n_elem = int(target.size)
    assert n_elem > 0, "empty input"

    # Native dtype throughout: the kernel upcasts in VMEM, so no host-side
    # f32 materialization (saves HBM traffic for narrow input dtypes).
    t_flat = jnp.ravel(target)
    m_flat = jnp.ravel(mu)
    s_flat = jnp.ravel(sigma_y)

    rows = n_elem // _LANES          # full lane-dense rows
    main = rows * _LANES
    rem = n_elem - main              # < 128 leftover elements

    total = jnp.float32(0.0)

    if rows > 0:
        itemsizes = [a.dtype.itemsize for a in (t_flat, m_flat, s_flat)]
        # Sublane packing of the narrowest streamed dtype: 8 rows for f32,
        # 16 for bf16/f16, 32 for 8-bit types.
        sublane = 32 // min(max(min(itemsizes), 1), 4)
        max_bytes_per_row = _LANES * max(itemsizes)
        max_rows = max(
            sublane,
            (_TILE_BYTES_PER_INPUT // max_bytes_per_row) // sublane * sublane)
        tile_rows = min(max_rows, _round_up(rows, sublane))

        num_blocks = -(-rows // tile_rows)
        # Split across TensorCores only where a second core exists (v7x); on
        # v5e/v6e an extra partition is just a serial loop with phantom blocks.
        n_parts = 2 if (_tensorcores_per_chip() >= 2 and num_blocks >= 2) else 1
        blocks_per_part = -(-num_blocks // n_parts)
        has_phantom = blocks_per_part * n_parts != num_blocks
        needs_mask = (rows % tile_rows != 0) or has_phantom

        if has_phantom:
            # Keep the phantom block's DMA in bounds; its data is masked out.
            def in_idx(c, i):
                return (jnp.minimum(c * blocks_per_part + i, num_blocks - 1), 0)
        else:
            def in_idx(c, i):
                return (c * blocks_per_part + i, 0)

        in_spec = pl.BlockSpec((tile_rows, _LANES), in_idx)

        kernel = functools.partial(
            _map_loss_kernel,
            tile_rows=tile_rows,
            blocks_per_part=blocks_per_part,
            rows=rows,
            needs_mask=needs_mask,
        )

        if n_parts == 2:
            # Plain "parallel" is not guaranteed to shard across TensorCores;
            # CORE_PARALLEL is (leading axis size == core count on v7x).
            dim_sem = (pltpu.CORE_PARALLEL, pltpu.ARBITRARY)
        else:
            dim_sem = ("arbitrary", "arbitrary")

        # Free prefix slice (no full-array pad/copy) when numel % 128 != 0.
        t_main = t_flat[:main] if rem else t_flat
        m_main = m_flat[:main] if rem else m_flat
        s_main = s_flat[:main] if rem else s_flat

        partials = pl.pallas_call(
            kernel,
            out_shape=jax.ShapeDtypeStruct((n_parts * 8, _LANES), jnp.float32),
            grid_spec=pltpu.PrefetchScalarGridSpec(
                num_scalar_prefetch=0,
                grid=(n_parts, blocks_per_part),
                in_specs=[in_spec, in_spec, in_spec],
                out_specs=pl.BlockSpec((8, _LANES), lambda c, i: (c, 0)),
            ),
            compiler_params=pltpu.CompilerParams(dimension_semantics=dim_sem),
        )(t_main.reshape(rows, _LANES),
          m_main.reshape(rows, _LANES),
          s_main.reshape(rows, _LANES))

        # Single tiny cross-lane reduce (<= 2*8*128 partials) done by XLA.
        total = total + jnp.sum(partials)

    if rem:
        # < 128 leftover elements: plain-JAX sum instead of padding (and
        # re-copying) all three full arrays.
        t_t = t_flat[main:].astype(jnp.float32)
        m_t = m_flat[main:].astype(jnp.float32)
        s_t = s_flat[main:].astype(jnp.float32)
        d = t_t - m_t
        total = total + jnp.sum(d * d / s_t + jnp.log(s_t))

    return total / jnp.float32(n_elem)


if __name__ == "__main__":
    key = jax.random.PRNGKey(0)
    k1, k2, k3, k4, k5 = jax.random.split(key, 5)

    shape = (2, 4, 16, 16)  # small NCHW tensors, as in an image-denoising loss
    target = jax.random.normal(k1, shape, dtype=jnp.float32)
    mu = jax.random.normal(k2, shape, dtype=jnp.float32)
    sigma_mu = jax.random.uniform(k3, shape, jnp.float32, 0.5, 2.0)  # unused fwd
    sigma_n = jax.random.uniform(k4, shape, jnp.float32, 0.5, 2.0)   # unused fwd
    sigma_y = jax.random.uniform(k5, shape, jnp.float32, 0.5, 2.0)

    loss_fn = jax.jit(map_loss_pretrain)
    loss = jax.block_until_ready(loss_fn(target, mu, sigma_mu, sigma_n, sigma_y))

    ref = jnp.mean((target - mu) ** 2 / sigma_y + jnp.log(sigma_y))
    assert jnp.allclose(loss, ref, rtol=1e-5, atol=1e-5), (loss, ref)

    # Ragged shape: exercises the pl.when-gated partial-block mask and the
    # <128-element plain-JAX tail path (numel = 1326 = 10*128 + 46).
    shape2 = (2, 3, 13, 17)
    kk = jax.random.split(k5, 3)
    t2 = jax.random.normal(kk[0], shape2, dtype=jnp.float32)
    m2 = jax.random.normal(kk[1], shape2, dtype=jnp.float32)
    s2 = jax.random.uniform(kk[2], shape2, jnp.float32, 0.5, 2.0)
    loss2 = jax.block_until_ready(jax.jit(map_loss_pretrain)(t2, m2, s2, s2, s2))
    ref2 = jnp.mean((t2 - m2) ** 2 / s2 + jnp.log(s2))
    assert jnp.allclose(loss2, ref2, rtol=1e-5, atol=1e-5), (loss2, ref2)

    print("KERNEL_OK")
</pallas_src>

<mosaic_0001>
module attributes {stable_mosaic.version = 11 : i64} {
  func.func @_map_loss_kernel(%arg0: i32, %arg1: i32, %arg2: memref<16x128xf32, #tpu.memory_space<vmem>>, %arg3: memref<16x128xf32, #tpu.memory_space<vmem>>, %arg4: memref<16x128xf32, #tpu.memory_space<vmem>>, %arg5: memref<8x128xf32, #tpu.memory_space<vmem>>) attributes {dimension_semantics = [#tpu.dimension_semantics<arbitrary>, #tpu.dimension_semantics<arbitrary>], iteration_bounds = array<i64: 1, 1>, scalar_prefetch = 0 : i64, scratch_operands = 0 : i64, tpu.core_type = #tpu.core_type<tc>, window_params = [{transform_indices = @transform_0, window_bounds = array<i64: 16, 128>}, {transform_indices = @transform_1, window_bounds = array<i64: 16, 128>}, {transform_indices = @transform_2, window_bounds = array<i64: 16, 128>}, {transform_indices = @transform_3, window_bounds = array<i64: 8, 128>}]} {
    %c0_i32 = arith.constant 0 : i32
    %0 = arith.cmpi eq, %arg1, %c0_i32 : i32
    %1 = arith.extui %0 : i1 to i32
    %c0_i32_0 = arith.constant 0 : i32
    %2 = arith.cmpi ne, %1, %c0_i32_0 : i32
    scf.if %2 {
      %cst_10 = arith.constant 0.000000e+00 : f32
      %16 = vector.broadcast %cst_10 : f32 to vector<8x128xf32>
      %c0_11 = arith.constant 0 : index
      %c0_12 = arith.constant 0 : index
      %17 = vector.load %arg5[%c0_11, %c0_12] : memref<8x128xf32, #tpu.memory_space<vmem>>, vector<8x128xf32>
      tpu.vector_store %arg5[%c0_11, %c0_12], %16 {strides = array<i32>} : memref<8x128xf32, #tpu.memory_space<vmem>>, vector<8x128xf32>,
    } else {
    }
    %c0 = arith.constant 0 : index
    %c0_1 = arith.constant 0 : index
    %3 = vector.load %arg2[%c0, %c0_1] : memref<16x128xf32, #tpu.memory_space<vmem>>, vector<16x128xf32>
    %c0_2 = arith.constant 0 : index
    %c0_3 = arith.constant 0 : index
    %4 = vector.load %arg3[%c0_2, %c0_3] : memref<16x128xf32, #tpu.memory_space<vmem>>, vector<16x128xf32>
    %c0_4 = arith.constant 0 : index
    %c0_5 = arith.constant 0 : index
    %5 = vector.load %arg4[%c0_4, %c0_5] : memref<16x128xf32, #tpu.memory_space<vmem>>, vector<16x128xf32>
    %6 = arith.subf %3, %4 : vector<16x128xf32>
    %7 = arith.mulf %6, %6 : vector<16x128xf32>
    %8 = arith.divf %7, %5 : vector<16x128xf32>
    %9 = math.log %5 : vector<16x128xf32>
    %10 = arith.addf %8, %9 : vector<16x128xf32>
    %c0_6 = arith.constant 0 : index
    %c0_7 = arith.constant 0 : index
    %11 = vector.load %arg5[%c0_6, %c0_7] : memref<8x128xf32, #tpu.memory_space<vmem>>, vector<8x128xf32>
    %12 = vector.shape_cast %10 : vector<16x128xf32> to vector<2x8x128xf32>
    %cst = arith.constant dense<0.000000e+00> : vector<8x128xf32>
    %13 = vector.multi_reduction <add>, %12, %cst [0] : vector<2x8x128xf32> to vector<8x128xf32>
    %14 = arith.addf %11, %13 : vector<8x128xf32>
    %c0_8 = arith.constant 0 : index
    %c0_9 = arith.constant 0 : index
    %15 = vector.load %arg5[%c0_8, %c0_9] : memref<8x128xf32, #tpu.memory_space<vmem>>, vector<8x128xf32>
    tpu.vector_store %arg5[%c0_8, %c0_9], %14 {strides = array<i32>} : memref<8x128xf32, #tpu.memory_space<vmem>>, vector<8x128xf32>,
    return
  }
  func.func @transform_0(%arg0: i32, %arg1: i32) -> (i32, i32) {
    %c1_i32 = arith.constant 1 : i32
    %0 = arith.muli %arg0, %c1_i32 : i32
    %1 = arith.addi %0, %arg1 : i32
    %c0_i32 = arith.constant 0 : i32
    %c0_i32_0 = arith.constant 0 : i32
    return %1, %c0_i32 : i32, i32
  }
  func.func @transform_1(%arg0: i32, %arg1: i32) -> (i32, i32) {
    %c1_i32 = arith.constant 1 : i32
    %0 = arith.muli %arg0, %c1_i32 : i32
    %1 = arith.addi %0, %arg1 : i32
    %c0_i32 = arith.constant 0 : i32
    %c0_i32_0 = arith.constant 0 : i32
    return %1, %c0_i32 : i32, i32
  }
  func.func @transform_2(%arg0: i32, %arg1: i32) -> (i32, i32) {
    %c1_i32 = arith.constant 1 : i32
    %0 = arith.muli %arg0, %c1_i32 : i32
    %1 = arith.addi %0, %arg1 : i32
    %c0_i32 = arith.constant 0 : i32
    %c0_i32_0 = arith.constant 0 : i32
    return %1, %c0_i32 : i32, i32
  }
  func.func @transform_3(%arg0: i32, %arg1: i32) -> (i32, i32) {
    %c0_i32 = arith.constant 0 : i32
    %c0_i32_0 = arith.constant 0 : i32
    return %arg0, %c0_i32 : i32, i32
  }
}

</mosaic_0001>

<llo_original>
// kernel: map_loss_pretrain.1
$region0: #{map_loss_pretrain.1}
  #allocation0 [shape = 'u32[]', space=smem, size = 0x4, offset = 0x4, fixed_abs, tag = 'smem constant byte address 0x4 - core index']
  #allocation1 [shape = 'u32[72,128]{1,0:T(1,128)}', space=vmem, size = 0x9000, scoped, tag = 'internal scratch']
  %s0 = inlined_call_operand.vmem [shape: f32[16,128], index: 0, kind: input, shape index: {}]
  %s1 = inlined_call_operand.vmem [shape: f32[16,128], index: 1, kind: input, shape index: {}]
  %s2 = inlined_call_operand.vmem [shape: f32[16,128], index: 2, kind: input, shape index: {}]
  %s3 = inlined_call_operand.vmem [shape: f32[8,128], index: 3, kind: output, shape index: {}]
  %s4 = sld [smem:[#allocation0]]
  $region26: #{map_loss_pretrain.1} parent=0
    _
  %s6 = ssub.s32 1, %s4
  %s7 = scalar_select 0, %s6, %s4
  // Predicated region
  $region2: #{map_loss_pretrain.1} parent=0 // pred_check
    _
  $region3: #{map_loss_pretrain.1} parent=0 // pred_check_branch
    %9 = sbr.rel (0) target = $region5
  $region4: #{map_loss_pretrain.1} parent=0 // pred_region
    %s10 = sadd.s32 0, 0
    %s11 = smul.u32 2, %s10
    %p12 = scmp.lt.s32.totalorder %s11, 1
    %s13 = scalar_select %p12, %s11, 1
    %s14 = smul.addr %s13, 8
    %s15 = scalar_lea.vmem %s0, %s14
    %s16 = sadd.s32 0, 0
    %s17 = smul.u32 2, %s16
  $region5: #{map_loss_pretrain.1} parent=0 // pred_fallthru
    _
  // Predicated region
  $region6: #{map_loss_pretrain.1} parent=0 // pred_check
    _
  $region7: #{map_loss_pretrain.1} parent=0 // pred_check_branch
    %19 = sbr.rel (0) target = $region9
  $region8: #{map_loss_pretrain.1} parent=0 // pred_region
    %s20 = sadd.s32 0, 0
    %s21 = smul.u32 2, %s20
    %p22 = scmp.lt.s32.totalorder %s21, 1
    %s23 = scalar_select %p22, %s21, 1
    %s24 = smul.addr %s23, 8
    %s25 = scalar_lea.vmem %s1, %s24
    %s26 = sadd.s32 0, 0
    %s27 = smul.u32 2, %s26
  $region9: #{map_loss_pretrain.1} parent=0 // pred_fallthru
    _
  // Predicated region
  $region10: #{map_loss_pretrain.1} parent=0 // pred_check
    _
  $region11: #{map_loss_pretrain.1} parent=0 // pred_check_branch
    %29 = sbr.rel (0) target = $region13
  $region12: #{map_loss_pretrain.1} parent=0 // pred_region
    %s30 = sadd.s32 0, 0
    %s31 = smul.u32 2, %s30
    %p32 = scmp.lt.s32.totalorder %s31, 1
    %s33 = scalar_select %p32, %s31, 1
    %s34 = smul.addr %s33, 8
    %s35 = scalar_lea.vmem %s2, %s34
    %s36 = sadd.s32 0, 0
    %s37 = smul.u32 2, %s36
  $region13: #{map_loss_pretrain.1} parent=0 // pred_fallthru
    _
  %s38 = sadd.s32 0, 0
  %s39 = smul.u32 2, %s38
  %p40 = scmp.lt.s32.totalorder %s39, 1
  %s41 = scalar_select %p40, %s39, 1
  %s42 = smul.addr %s41, 8
  %s43 = scalar_lea.vmem %s0, %s42
  %s44 = sadd.s32 0, 0
  %s45 = smul.u32 2, %s44
  %p46 = scmp.lt.s32.totalorder %s45, 1
  %s47 = scalar_select %p46, %s45, 1
  %s48 = smul.addr %s47, 8
  %s49 = scalar_lea.vmem %s1, %s48
  %s50 = sadd.s32 0, 0
  %s51 = smul.u32 2, %s50
  %p52 = scmp.lt.s32.totalorder %s51, 1
  %s53 = scalar_select %p52, %s51, 1
  %s54 = smul.addr %s53, 8
  %s55 = scalar_lea.vmem %s2, %s54
  %s56 = sadd.s32 0, 0
  %s57 = smul.u32 2, %s56
  %p58 = scmp.lt.s32.totalorder %s57, 1
  %s59 = scalar_select %p58, %s57, 1
  %s60 = smul.addr %s59, 8
  %s61 = scalar_lea.vmem %s0, %s60
  %s62 = sadd.s32 0, 0
  %s63 = smul.u32 2, %s62
  %s64 = sadd.s32 0, 0
  %s65 = smul.u32 2, %s64
  %p66 = scmp.lt.s32.totalorder %s65, 1
  %s67 = scalar_select %p66, %s65, 1
  %s68 = smul.addr %s67, 8
  %s69 = scalar_lea.vmem %s1, %s68
  %s70 = sadd.s32 0, 0
  %s71 = smul.u32 2, %s70
  %s72 = sadd.s32 0, 0
  %s73 = smul.u32 2, %s72
  %p74 = scmp.lt.s32.totalorder %s73, 1
  %s75 = scalar_select %p74, %s73, 1
  %s76 = smul.addr %s75, 8
  %s77 = scalar_lea.vmem %s2, %s76
  %s78 = sadd.s32 0, 0
  %s79 = smul.u32 2, %s78
  %p80 = scmp.eq.s32.totalorder 0, 0
  // Predicated region
  $region14: #{map_loss_pretrain.1} parent=0 // pred_check
    %p81 = pneg %p80
  $region15: #{map_loss_pretrain.1} parent=0 // pred_check_branch
    %83 = sbr.rel (%p81) target = $region17
  $region16: #{map_loss_pretrain.1} parent=0 // pred_region
    %84 = vst [vmem:[%s3] sm:$0xff] 0.0
  $region17: #{map_loss_pretrain.1} parent=0 // pred_fallthru
    _
  %v85 = vld [vmem:[%s61] sm:$0xff]
  %v86 = vld [vmem:[%s61 + $0x8] sm:$0xff]
  %v87 = vld [vmem:[%s69] sm:$0xff]
  %v88 = vld [vmem:[%s69 + $0x8] sm:$0xff]
  %v89 = vld [vmem:[%s77] sm:$0xff]
  %v90 = vld [vmem:[%s77 + $0x8] sm:$0xff]
  %v91 = vsub.f32 %v85, %v87
  %v92 = vsub.f32 %v86, %v88
  %v93 = vmul.f32 %v91, %v91
  %v94 = vmul.f32 %v92, %v92
  %v95 = vrcp.pop %v89
  %v96 = vmul.f32 %v89, %v95
  %v97 = vsub.f32 1.0, %v96
  %v98 = vmul.f32 %v95, %v97
  %v99 = vadd.f32 %v95, %v98
  %vm100 = vweird.f32 %v89
  %vm101 = vweird.f32 %v95
  %vm102 = vmor %vm100, %vm101
  %v103 = vsel %vm102, %v95, %v99
  %v104 = vand.u32 2147483647, %v89
  %vm105 = vcmp.eq.f32.partialorder %v104, 8.507059e+37
  %v106 = vand.u32 %v89, 2147483648
  %v107 = vor.u32 1.1754944e-38, %v106
  %v108 = vsel %vm105, %v107, %v103
  %v109 = vmul.f32 %v93, %v108
  %v110 = vrcp.pop %v90
  %v111 = vmul.f32 %v90, %v110
  %v112 = vsub.f32 1.0, %v111
  %v113 = vmul.f32 %v110, %v112
  %v114 = vadd.f32 %v110, %v113
  %vm115 = vweird.f32 %v90
  %vm116 = vweird.f32 %v110
  %vm117 = vmor %vm115, %vm116
  %v118 = vsel %vm117, %v110, %v114
  %v119 = vand.u32 2147483647, %v90
  %vm120 = vcmp.eq.f32.partialorder %v119, 8.507059e+37
  %v121 = vand.u32 %v90, 2147483648
  %v122 = vor.u32 1.1754944e-38, %v121
  %v123 = vsel %vm120, %v122, %v118
  %v124 = vmul.f32 %v94, %v123
  %v125 = vlog2.pop %v89
  %v126 = vmul.f32 %v125, 0.6931472
  %v127 = vlog2.pop %v90
  %v128 = vmul.f32 %v127, 0.6931472
  %v129 = vadd.f32 %v109, %v126
  %v130 = vadd.f32 %v124, %v128
  %v131 = vld [vmem:[%s3] sm:$0xff]
  %v132 = vadd.f32 %v129, %v130
  %v133 = vadd.f32 %v131, %v132
  %134 = vst [vmem:[%s3] sm:$0xff] %v133
  // Predicated region
  $region18: #{map_loss_pretrain.1} parent=0 // pred_check
    _
  $region19: #{map_loss_pretrain.1} parent=0 // pred_check_branch
    %136 = sbr.rel (0) target = $region21
  $region20: #{map_loss_pretrain.1} parent=0 // pred_region
    _
  $region21: #{map_loss_pretrain.1} parent=0 // pred_fallthru
    _
  // Predicated region
  $region22: #{map_loss_pretrain.1} parent=0 // pred_check
    _
  $region23: #{map_loss_pretrain.1} parent=0 // pred_check_branch
    %138 = sbr.rel (0) target = $region25
  $region24: #{map_loss_pretrain.1} parent=0 // pred_region
    _
  $region25: #{map_loss_pretrain.1} parent=0 // pred_fallthru
    _

</llo_original>
